<compile_context>
chip_gen: v7x
topology: tpu7x:2x2x1
jax: 0.10.0
libtpu: 0.0.40
codegen_flags: <defaults>
</compile_context>

<pallas_src>
import functools

import jax
import jax.numpy as jnp
from jax import lax
from jax.experimental import pallas as pl
from jax.experimental.pallas import tpu as pltpu


def _cdiv(a, b):
    return (a + b - 1) // b


def _round_up(a, m):
    return _cdiv(a, m) * m


def _resblock_kernel(*refs, K, cin_p, cout_p, has_proj, compute_dtype):
    """One batch block per grid step, fully batched (no per-element unroll).

    x_ref : (B_blk, L, Cin)       un-padded input tile (NLC layout)
    w1_ref: (K*Cin_p, Cout_p)     conv1 weights, tap-concat, BN1 scale folded
    b1_ref: (1, Cout_p)           folded BN1 shift (f32)
    w2_ref: (K*Cout_p, Cout_p)    conv2 weights, tap-concat, BN2 scale folded
    b2_ref: (1, Cout_p)           folded BN2 shift (f32)
    ws_ref: (Cin_p, Cout_p)       shortcut 1x1 conv, BN scale folded (proj only)
    bs_ref: (1, Cout_p)           folded shortcut BN shift         (proj only)
    o_ref : (B_blk, L, Cout_p)    lane-dense output
    """
    if has_proj:
        x_ref, w1_ref, b1_ref, w2_ref, b2_ref, ws_ref, bs_ref, o_ref = refs
    else:
        x_ref, w1_ref, b1_ref, w2_ref, b2_ref, o_ref = refs

    B, L, cin = x_ref.shape
    M = B * L
    P = K // 2

    # ---- load whole tile once, flatten batch*length, lane-pad in-register --
    x = x_ref[...].reshape(M, cin).astype(jnp.float32)            # (M, Cin)
    if cin_p != cin:
        x = jnp.concatenate(
            [x, jnp.zeros((M, cin_p - cin), jnp.float32)], axis=-1)

    # Per-row position within its sequence (shared by both convs' halo masks).
    l_idx = lax.broadcasted_iota(jnp.int32, (B, L, 1), 1).reshape(M, 1)

    def tap_stack(a):
        """Concat of K shifted copies of `a` (M, C); zero outside [0, L).

        Shifts run on the XLU (pltpu.roll) + a cheap VPU select, instead of
        materializing sublane-misaligned slice/concat copies.  Rolling the
        flattened B*L axis is safe: every row that would cross a sequence
        boundary is exactly a row the edge mask zeroes out.
        """
        taps = []
        for k in range(K):
            d = k - P                         # tap k reads x[l + d] (zero-padded)
            if d == 0:
                taps.append(a)
                continue
            shifted = pltpu.roll(a, shift=(-d) % M, axis=0)
            valid = (l_idx >= -d) & (l_idx < L - d)
            taps.append(jnp.where(valid, shifted, 0.0))
        return jnp.concatenate(taps, axis=-1)                     # (M, K*C)

    # ---- conv1 (+ folded BN1) + ReLU: one MXU contraction over K*Cin_p -----
    xcat = tap_stack(x)
    h = jnp.dot(xcat.astype(compute_dtype), w1_ref[...],
                preferred_element_type=jnp.float32)
    h = jnp.maximum(h + b1_ref[...], 0.0)
    # dropout: identity in eval mode

    # ---- conv2 (+ folded BN2): one MXU contraction over K*Cout_p -----------
    hcat = tap_stack(h)
    out = jnp.dot(hcat.astype(compute_dtype), w2_ref[...],
                  preferred_element_type=jnp.float32) + b2_ref[...]

    # ---- shortcut -----------------------------------------------------------
    if has_proj:
        ident = jnp.dot(x.astype(compute_dtype), ws_ref[...],
                        preferred_element_type=jnp.float32) + bs_ref[...]
    else:
        ident = x                                    # Cin_p == Cout_p, VPU add

    o_ref[...] = jnp.maximum(out + ident, 0.0).reshape(
        B, L, cout_p).astype(o_ref.dtype)


def _fold_bn(gamma, beta, mean, var, eps):
    scale = gamma / jnp.sqrt(var + eps)
    shift = beta - mean * scale
    return scale, shift


def residual_block_forward(x, params, kernel_size=3, *, eps=1e-5,
                           compute_dtype=jnp.float32, batch_block=None,
                           lane_multiple=128,
                           vmem_budget_bytes=40 * 2**20):
    """x: (N, Cin, L) float32 (PyTorch NCL layout). Returns (N, Cout, L).

    Eval-mode semantics (dropout = identity, BatchNorm = running stats).
    Set compute_dtype=jnp.bfloat16 for production speed (f32 accumulation).
    """
    N, Cin, L = x.shape
    K = kernel_size
    assert K % 2 == 1, "only odd kernel_size ('same' padding) is supported"
    Cout = params["w1"].shape[0]
    has_proj = params.get("ws") is not None
    if not has_proj:
        assert Cin == Cout, "identity shortcut requires in_channels == out_channels"

    Cin_p = _round_up(Cin, lane_multiple)
    Cout_p = _round_up(Cout, lane_multiple)

    s1, b1 = _fold_bn(*params["bn1"], eps)
    s2, b2 = _fold_bn(*params["bn2"], eps)

    # torch Conv1d weight (Cout, Cin, K) -> tap-major (K, Cin, Cout), fold BN
    # scale into output channels, lane-pad, concat taps -> (K*Cin_p, Cout_p),
    # and pre-cast to the compute dtype (no in-kernel cast of invariant data).
    def prep_conv_w(w, scale, cin, cin_pad):
        wt = jnp.transpose(w, (2, 1, 0)).astype(jnp.float32) * scale[None, None, :]
        wt = jnp.pad(wt, ((0, 0), (0, cin_pad - cin), (0, Cout_p - Cout)))
        return wt.reshape(K * cin_pad, Cout_p).astype(compute_dtype)

    def prep_bias(shift):  # added post-accumulation -> keep f32
        return jnp.pad(shift, (0, Cout_p - Cout)).reshape(1, Cout_p).astype(jnp.float32)

    w1c = prep_conv_w(params["w1"], s1, Cin, Cin_p)
    w2c = prep_conv_w(params["w2"], s2, Cout, Cout_p)

    inputs = [None, w1c, prep_bias(b1), w2c, prep_bias(b2)]
    in_specs = [
        None,
        pl.BlockSpec((K * Cin_p, Cout_p), lambda n: (0, 0)),
        pl.BlockSpec((1, Cout_p), lambda n: (0, 0)),
        pl.BlockSpec((K * Cout_p, Cout_p), lambda n: (0, 0)),
        pl.BlockSpec((1, Cout_p), lambda n: (0, 0)),
    ]
    if has_proj:
        ss, bs = _fold_bn(*params["bns"], eps)
        ws = jnp.transpose(params["ws"][:, :, 0], (1, 0)).astype(jnp.float32) * ss[None, :]
        wsp = jnp.pad(ws, ((0, Cin_p - Cin), (0, Cout_p - Cout))).astype(compute_dtype)
        inputs += [wsp, prep_bias(bs)]
        in_specs += [pl.BlockSpec((Cin_p, Cout_p), lambda n: (0, 0)),
                     pl.BlockSpec((1, Cout_p), lambda n: (0, 0))]

    # NCL -> NLC (L on sublanes, C on lanes).  For a stack of blocks, keep
    # activations in NLC across layers to avoid this transpose per block.
    x_nlc = jnp.transpose(x, (0, 2, 1)).astype(jnp.float32)

    # ---- VMEM-budgeted batch blocking --------------------------------------
    w_item = jnp.dtype(compute_dtype).itemsize

    def est_bytes(b):
        m = b * L
        io = 2 * b * L * (Cin + Cout_p) * 4                     # 2x-buffered x / o tiles
        wts = 2 * ((K * Cin_p + K * Cout_p + Cin_p) * Cout_p * w_item
                   + 4 * Cout_p * 4)                            # weights + biases
        tmp = m * (Cin_p + 2 * K * Cin_p + 2 * K * Cout_p + 3 * Cout_p) * 4
        return io + wts + tmp

    if batch_block is None:
        # Target ~512 rows of M = B_blk*L per step (amortize ~0.35us per-step
        # overhead, fill the MXU), stay inside the VMEM budget (v7x: 64 MiB),
        # and keep >= 4 balanced grid steps when N allows (two v7x TCs +
        # pipeline overlap room).  NB: keep B_blk*L a multiple of 8 when L is.
        batch_block = max(1, min(N, _cdiv(512, max(L, 1))))
        while batch_block > 1 and est_bytes(batch_block) > vmem_budget_bytes:
            batch_block -= 1
        target_steps = min(4, N)
        batch_block = max(1, min(batch_block, N // target_steps))

    N_pad = _round_up(N, batch_block)
    if N_pad != N:
        x_nlc = jnp.pad(x_nlc, ((0, N_pad - N), (0, 0), (0, 0)))
    grid = (N_pad // batch_block,)

    inputs[0] = x_nlc
    in_specs[0] = pl.BlockSpec((batch_block, L, Cin), lambda n: (n, 0, 0))

    # Scoped-VMEM limit: at least the v6e/v7x default (32 MiB), raised toward
    # the working-set estimate, never past v7x's 64 MiB physical VMEM.
    vmem_limit = int(min(max(2 * est_bytes(batch_block), 32 * 2**20), 64 * 2**20))

    kernel = functools.partial(
        _resblock_kernel, K=K, cin_p=Cin_p, cout_p=Cout_p,
        has_proj=has_proj, compute_dtype=compute_dtype)

    out_p = pl.pallas_call(
        kernel,
        out_shape=jax.ShapeDtypeStruct((N_pad, L, Cout_p), jnp.float32),
        grid_spec=pltpu.PrefetchScalarGridSpec(
            num_scalar_prefetch=0,
            grid=grid,
            in_specs=in_specs,
            out_specs=pl.BlockSpec((batch_block, L, Cout_p), lambda n: (n, 0, 0)),
        ),
        compiler_params=pltpu.CompilerParams(
            dimension_semantics=("parallel",),
            vmem_limit_bytes=vmem_limit),
    )(*inputs)

    # Strip lane / batch padding (a no-op when Cout is already 128-aligned).
    out = out_p[:N, :, :Cout]
    return jnp.transpose(out, (0, 2, 1))


# ---------------------------- pure-JAX reference ----------------------------
def _ref_conv1d(x, w, pad):
    # x (N, C, L), w (Cout, Cin, K), stride=1 cross-correlation (PyTorch semantics)
    N, C, L = x.shape
    K = w.shape[2]
    xp = jnp.pad(x, ((0, 0), (0, 0), (pad, pad)))
    cols = jnp.stack([xp[:, :, k:k + L] for k in range(K)], axis=-1)  # (N,C,L,K)
    return jnp.einsum('nclk,ock->nol', cols, w)


def _ref_bn(y, gamma, beta, mean, var, eps=1e-5):
    return (y - mean[None, :, None]) / jnp.sqrt(var[None, :, None] + eps) \
        * gamma[None, :, None] + beta[None, :, None]


def residual_block_reference(x, params, kernel_size=3):
    P = kernel_size // 2
    out = _ref_conv1d(x, params["w1"], P)
    out = _ref_bn(out, *params["bn1"])
    out = jnp.maximum(out, 0.0)
    out = _ref_conv1d(out, params["w2"], P)
    out = _ref_bn(out, *params["bn2"])
    if params.get("ws") is not None:
        ident = _ref_conv1d(x, params["ws"], 0)
        ident = _ref_bn(ident, *params["bns"])
    else:
        ident = x
    return jnp.maximum(out + ident, 0.0)


# --------------------------------- main -------------------------------------
if __name__ == "__main__":
    N, Cin, Cout, L, K = 2, 4, 8, 16, 3

    key = jax.random.PRNGKey(0)
    ks = jax.random.split(key, 12)

    def bn_params(k, c):
        k0, k1, k2, k3 = jax.random.split(k, 4)
        gamma = 0.5 + jax.random.uniform(k0, (c,), jnp.float32)
        beta = 0.1 * jax.random.normal(k1, (c,), jnp.float32)
        mean = 0.1 * jax.random.normal(k2, (c,), jnp.float32)
        var = 0.5 + jax.random.uniform(k3, (c,), jnp.float32)
        return (gamma, beta, mean, var)

    # ---- variant 1: in_channels != out_channels -> projection shortcut ----
    params = {
        "w1": 0.1 * jax.random.normal(ks[0], (Cout, Cin, K), jnp.float32),
        "bn1": bn_params(ks[1], Cout),
        "w2": 0.1 * jax.random.normal(ks[2], (Cout, Cout, K), jnp.float32),
        "bn2": bn_params(ks[3], Cout),
        "ws": 0.1 * jax.random.normal(ks[4], (Cout, Cin, 1), jnp.float32),
        "bns": bn_params(ks[5], Cout),
    }
    x = jax.random.normal(ks[6], (N, Cin, L), jnp.float32)

    out = jax.block_until_ready(residual_block_forward(x, params, kernel_size=K))
    ref = jax.block_until_ready(residual_block_reference(x, params, kernel_size=K))
    assert out.shape == (N, Cout, L)
    assert jnp.allclose(out, ref, atol=5e-4, rtol=5e-4), \
        f"proj variant: max err {jnp.max(jnp.abs(out - ref))}"

    # ---- variant 2: in_channels == out_channels -> identity shortcut ------
    params_id = {
        "w1": 0.1 * jax.random.normal(ks[7], (Cout, Cout, K), jnp.float32),
        "bn1": bn_params(ks[8], Cout),
        "w2": 0.1 * jax.random.normal(ks[9], (Cout, Cout, K), jnp.float32),
        "bn2": bn_params(ks[10], Cout),
        "ws": None,
    }
    x2 = jax.random.normal(ks[11], (N, Cout, L), jnp.float32)

    out2 = jax.block_until_ready(residual_block_forward(x2, params_id, kernel_size=K))
    ref2 = jax.block_until_ready(residual_block_reference(x2, params_id, kernel_size=K))
    assert out2.shape == (N, Cout, L)
    assert jnp.allclose(out2, ref2, atol=5e-4, rtol=5e-4), \
        f"identity variant: max err {jnp.max(jnp.abs(out2 - ref2))}"

    # ---- variant 3: production bf16 matmul path (looser tolerance) --------
    out_bf16 = jax.block_until_ready(
        residual_block_forward(x, params, kernel_size=K,
                               compute_dtype=jnp.bfloat16))
    assert jnp.allclose(out_bf16, ref, atol=5e-2, rtol=5e-2), \
        f"bf16 variant: max err {jnp.max(jnp.abs(out_bf16 - ref))}"

    print("KERNEL_OK")
</pallas_src>

<mosaic_0001>
module attributes {stable_mosaic.version = 11 : i64} {
  func.func @_resblock_kernel(%arg0: i32, %arg1: memref<1x16x4xf32, #tpu.memory_space<vmem>>, %arg2: memref<384x128xf32, #tpu.memory_space<vmem>>, %arg3: memref<1x128xf32, #tpu.memory_space<vmem>>, %arg4: memref<384x128xf32, #tpu.memory_space<vmem>>, %arg5: memref<1x128xf32, #tpu.memory_space<vmem>>, %arg6: memref<128x128xf32, #tpu.memory_space<vmem>>, %arg7: memref<1x128xf32, #tpu.memory_space<vmem>>, %arg8: memref<1x16x128xf32, #tpu.memory_space<vmem>>) attributes {dimension_semantics = [#tpu.dimension_semantics<parallel>], iteration_bounds = array<i64: 2>, scalar_prefetch = 0 : i64, scratch_operands = 0 : i64, tpu.core_type = #tpu.core_type<tc>, window_params = [{transform_indices = @transform_0, window_bounds = array<i64: 1, 16, 4>}, {pipeline_mode = #tpu.pipeline_mode<synchronous>, transform_indices = @transform_1, window_bounds = array<i64: 384, 128>}, {pipeline_mode = #tpu.pipeline_mode<synchronous>, transform_indices = @transform_2, window_bounds = array<i64: 1, 128>}, {pipeline_mode = #tpu.pipeline_mode<synchronous>, transform_indices = @transform_3, window_bounds = array<i64: 384, 128>}, {pipeline_mode = #tpu.pipeline_mode<synchronous>, transform_indices = @transform_4, window_bounds = array<i64: 1, 128>}, {pipeline_mode = #tpu.pipeline_mode<synchronous>, transform_indices = @transform_5, window_bounds = array<i64: 128, 128>}, {pipeline_mode = #tpu.pipeline_mode<synchronous>, transform_indices = @transform_6, window_bounds = array<i64: 1, 128>}, {transform_indices = @transform_7, window_bounds = array<i64: 1, 16, 128>}]} {
    %c0 = arith.constant 0 : index
    %c0_0 = arith.constant 0 : index
    %c0_1 = arith.constant 0 : index
    %0 = vector.load %arg1[%c0, %c0_0, %c0_1] : memref<1x16x4xf32, #tpu.memory_space<vmem>>, vector<1x16x4xf32>
    %1 = vector.shape_cast %0 : vector<1x16x4xf32> to vector<16x4xf32>
    %cst = arith.constant 0.000000e+00 : f32
    %2 = vector.broadcast %cst : f32 to vector<16x124xf32>
    %3 = tpu.concatenate %1, %2 in 1 : vector<16x4xf32>, vector<16x124xf32> -> vector<16x128xf32>
    %4 = tpu.iota {dimensions = array<i32: 1>} : vector<1x16x1xi32>
    %5 = vector.shape_cast %4 : vector<1x16x1xi32> to vector<16x1xi32>
    %c1_i32 = arith.constant 1 : i32
    %6 = tpu.dynamic_rotate %3 by %c1_i32 dim 0 : vector<16x128xf32>, i32 -> vector<16x128xf32>
    %c1_i32_2 = arith.constant 1 : i32
    %7 = vector.broadcast %c1_i32_2 : i32 to vector<16x1xi32>
    %8 = arith.cmpi sge, %5, %7 : vector<16x1xi32>
    %c17_i32 = arith.constant 17 : i32
    %9 = vector.broadcast %c17_i32 : i32 to vector<16x1xi32>
    %10 = arith.cmpi slt, %5, %9 : vector<16x1xi32>
    %11 = arith.andi %8, %10 : vector<16x1xi1>
    %cst_3 = arith.constant 0.000000e+00 : f32
    %12 = vector.shape_cast %11 : vector<16x1xi1> to vector<16x1xi1>
    %13 = vector.broadcast %12 : vector<16x1xi1> to vector<16x128xi1>
    %14 = vector.broadcast %cst_3 : f32 to vector<16x128xf32>
    %15 = arith.select %13, %6, %14 : vector<16x128xi1>, vector<16x128xf32>
    %c15_i32 = arith.constant 15 : i32
    %16 = tpu.dynamic_rotate %3 by %c15_i32 dim 0 : vector<16x128xf32>, i32 -> vector<16x128xf32>
    %c-1_i32 = arith.constant -1 : i32
    %17 = vector.broadcast %c-1_i32 : i32 to vector<16x1xi32>
    %18 = arith.cmpi sge, %5, %17 : vector<16x1xi32>
    %c15_i32_4 = arith.constant 15 : i32
    %19 = vector.broadcast %c15_i32_4 : i32 to vector<16x1xi32>
    %20 = arith.cmpi slt, %5, %19 : vector<16x1xi32>
    %21 = arith.andi %18, %20 : vector<16x1xi1>
    %cst_5 = arith.constant 0.000000e+00 : f32
    %22 = vector.shape_cast %21 : vector<16x1xi1> to vector<16x1xi1>
    %23 = vector.broadcast %22 : vector<16x1xi1> to vector<16x128xi1>
    %24 = vector.broadcast %cst_5 : f32 to vector<16x128xf32>
    %25 = arith.select %23, %16, %24 : vector<16x128xi1>, vector<16x128xf32>
    %26 = tpu.concatenate %15, %3, %25 in 1 : vector<16x128xf32>, vector<16x128xf32>, vector<16x128xf32> -> vector<16x384xf32>
    %c0_6 = arith.constant 0 : index
    %c0_7 = arith.constant 0 : index
    %27 = vector.load %arg2[%c0_6, %c0_7] : memref<384x128xf32, #tpu.memory_space<vmem>>, vector<384x128xf32>
    %cst_8 = arith.constant dense<0.000000e+00> : vector<16x128xf32>
    %28 = tpu.matmul %26, %27, %cst_8 {dimension_numbers = #tpu.dot_dimension_numbers<[1], [0], [0], [1], [0, 0, 1, 1], [], []>} : vector<16x384xf32>, vector<384x128xf32>, vector<16x128xf32> -> vector<16x128xf32>
    %c0_9 = arith.constant 0 : index
    %c0_10 = arith.constant 0 : index
    %29 = vector.load %arg3[%c0_9, %c0_10] : memref<1x128xf32, #tpu.memory_space<vmem>>, vector<1x128xf32>
    %30 = vector.broadcast %29 : vector<1x128xf32> to vector<16x128xf32>
    %31 = arith.addf %28, %30 : vector<16x128xf32>
    %cst_11 = arith.constant 0.000000e+00 : f32
    %32 = vector.broadcast %cst_11 : f32 to vector<16x128xf32>
    %33 = arith.maximumf %31, %32 : vector<16x128xf32>
    %c1_i32_12 = arith.constant 1 : i32
    %34 = tpu.dynamic_rotate %33 by %c1_i32_12 dim 0 : vector<16x128xf32>, i32 -> vector<16x128xf32>
    %c1_i32_13 = arith.constant 1 : i32
    %35 = vector.broadcast %c1_i32_13 : i32 to vector<16x1xi32>
    %36 = arith.cmpi sge, %5, %35 : vector<16x1xi32>
    %c17_i32_14 = arith.constant 17 : i32
    %37 = vector.broadcast %c17_i32_14 : i32 to vector<16x1xi32>
    %38 = arith.cmpi slt, %5, %37 : vector<16x1xi32>
    %39 = arith.andi %36, %38 : vector<16x1xi1>
    %cst_15 = arith.constant 0.000000e+00 : f32
    %40 = vector.shape_cast %39 : vector<16x1xi1> to vector<16x1xi1>
    %41 = vector.broadcast %40 : vector<16x1xi1> to vector<16x128xi1>
    %42 = vector.broadcast %cst_15 : f32 to vector<16x128xf32>
    %43 = arith.select %41, %34, %42 : vector<16x128xi1>, vector<16x128xf32>
    %c15_i32_16 = arith.constant 15 : i32
    %44 = tpu.dynamic_rotate %33 by %c15_i32_16 dim 0 : vector<16x128xf32>, i32 -> vector<16x128xf32>
    %c-1_i32_17 = arith.constant -1 : i32
    %45 = vector.broadcast %c-1_i32_17 : i32 to vector<16x1xi32>
    %46 = arith.cmpi sge, %5, %45 : vector<16x1xi32>
    %c15_i32_18 = arith.constant 15 : i32
    %47 = vector.broadcast %c15_i32_18 : i32 to vector<16x1xi32>
    %48 = arith.cmpi slt, %5, %47 : vector<16x1xi32>
    %49 = arith.andi %46, %48 : vector<16x1xi1>
    %cst_19 = arith.constant 0.000000e+00 : f32
    %50 = vector.shape_cast %49 : vector<16x1xi1> to vector<16x1xi1>
    %51 = vector.broadcast %50 : vector<16x1xi1> to vector<16x128xi1>
    %52 = vector.broadcast %cst_19 : f32 to vector<16x128xf32>
    %53 = arith.select %51, %44, %52 : vector<16x128xi1>, vector<16x128xf32>
    %54 = tpu.concatenate %43, %33, %53 in 1 : vector<16x128xf32>, vector<16x128xf32>, vector<16x128xf32> -> vector<16x384xf32>
    %c0_20 = arith.constant 0 : index
    %c0_21 = arith.constant 0 : index
    %55 = vector.load %arg4[%c0_20, %c0_21] : memref<384x128xf32, #tpu.memory_space<vmem>>, vector<384x128xf32>
    %cst_22 = arith.constant dense<0.000000e+00> : vector<16x128xf32>
    %56 = tpu.matmul %54, %55, %cst_22 {dimension_numbers = #tpu.dot_dimension_numbers<[1], [0], [0], [1], [0, 0, 1, 1], [], []>} : vector<16x384xf32>, vector<384x128xf32>, vector<16x128xf32> -> vector<16x128xf32>
    %c0_23 = arith.constant 0 : index
    %c0_24 = arith.constant 0 : index
    %57 = vector.load %arg5[%c0_23, %c0_24] : memref<1x128xf32, #tpu.memory_space<vmem>>, vector<1x128xf32>
    %58 = vector.broadcast %57 : vector<1x128xf32> to vector<16x128xf32>
    %59 = arith.addf %56, %58 : vector<16x128xf32>
    %c0_25 = arith.constant 0 : index
    %c0_26 = arith.constant 0 : index
    %60 = vector.load %arg6[%c0_25, %c0_26] : memref<128x128xf32, #tpu.memory_space<vmem>>, vector<128x128xf32>
    %cst_27 = arith.constant dense<0.000000e+00> : vector<16x128xf32>
    %61 = tpu.matmul %3, %60, %cst_27 {dimension_numbers = #tpu.dot_dimension_numbers<[1], [0], [0], [1], [0, 0, 1, 1], [], []>} : vector<16x128xf32>, vector<128x128xf32>, vector<16x128xf32> -> vector<16x128xf32>
    %c0_28 = arith.constant 0 : index
    %c0_29 = arith.constant 0 : index
    %62 = vector.load %arg7[%c0_28, %c0_29] : memref<1x128xf32, #tpu.memory_space<vmem>>, vector<1x128xf32>
    %63 = vector.broadcast %62 : vector<1x128xf32> to vector<16x128xf32>
    %64 = arith.addf %61, %63 : vector<16x128xf32>
    %65 = arith.addf %59, %64 : vector<16x128xf32>
    %cst_30 = arith.constant 0.000000e+00 : f32
    %66 = vector.broadcast %cst_30 : f32 to vector<16x128xf32>
    %67 = arith.maximumf %65, %66 : vector<16x128xf32>
    %68 = vector.shape_cast %67 : vector<16x128xf32> to vector<1x16x128xf32>
    %c0_31 = arith.constant 0 : index
    %c0_32 = arith.constant 0 : index
    %c0_33 = arith.constant 0 : index
    %69 = vector.load %arg8[%c0_31, %c0_32, %c0_33] : memref<1x16x128xf32, #tpu.memory_space<vmem>>, vector<1x16x128xf32>
    tpu.vector_store %arg8[%c0_31, %c0_32, %c0_33], %68 {strides = array<i32>} : memref<1x16x128xf32, #tpu.memory_space<vmem>>, vector<1x16x128xf32>,
    return
  }
  func.func @transform_0(%arg0: i32) -> (i32, i32, i32) {
    %c0_i32 = arith.constant 0 : i32
    %c0_i32_0 = arith.constant 0 : i32
    %c0_i32_1 = arith.constant 0 : i32
    return %arg0, %c0_i32, %c0_i32_0 : i32, i32, i32
  }
  func.func @transform_1(%arg0: i32) -> (i32, i32) {
    %c0_i32 = arith.constant 0 : i32
    %c0_i32_0 = arith.constant 0 : i32
    %c0_i32_1 = arith.constant 0 : i32
    return %c0_i32, %c0_i32_0 : i32, i32
  }
  func.func @transform_2(%arg0: i32) -> (i32, i32) {
    %c0_i32 = arith.constant 0 : i32
    %c0_i32_0 = arith.constant 0 : i32
    %c0_i32_1 = arith.constant 0 : i32
    return %c0_i32, %c0_i32_0 : i32, i32
  }
  func.func @transform_3(%arg0: i32) -> (i32, i32) {
    %c0_i32 = arith.constant 0 : i32
    %c0_i32_0 = arith.constant 0 : i32
    %c0_i32_1 = arith.constant 0 : i32
    return %c0_i32, %c0_i32_0 : i32, i32
  }
  func.func @transform_4(%arg0: i32) -> (i32, i32) {
    %c0_i32 = arith.constant 0 : i32
    %c0_i32_0 = arith.constant 0 : i32
    %c0_i32_1 = arith.constant 0 : i32
    return %c0_i32, %c0_i32_0 : i32, i32
  }
  func.func @transform_5(%arg0: i32) -> (i32, i32) {
    %c0_i32 = arith.constant 0 : i32
    %c0_i32_0 = arith.constant 0 : i32
    %c0_i32_1 = arith.constant 0 : i32
    return %c0_i32, %c0_i32_0 : i32, i32
  }
  func.func @transform_6(%arg0: i32) -> (i32, i32) {
    %c0_i32 = arith.constant 0 : i32
    %c0_i32_0 = arith.constant 0 : i32
    %c0_i32_1 = arith.constant 0 : i32
    return %c0_i32, %c0_i32_0 : i32, i32
  }
  func.func @transform_7(%arg0: i32) -> (i32, i32, i32) {
    %c0_i32 = arith.constant 0 : i32
    %c0_i32_0 = arith.constant 0 : i32
    %c0_i32_1 = arith.constant 0 : i32
    return %arg0, %c0_i32, %c0_i32_0 : i32, i32, i32
  }
}

</mosaic_0001>

<llo_original>
// kernel: tpu_custom_call.1
$region0: #{tpu_custom_call.1}
  #allocation0 [shape = 'u32[]', space=smem, size = 0x4, offset = 0x4, fixed_abs, tag = 'smem constant byte address 0x4 - core index']
  #allocation1 [shape = 'u32[144,128]{1,0:T(1,128)}', space=vmem, size = 0x12000, scoped, tag = 'internal scratch']
  %s0 = inlined_call_operand.vmem [shape: f32[2,16,4], index: 0, kind: input, shape index: {}]
  %s1 = inlined_call_operand.hbm [shape: f32[384,128], index: 1, kind: input, shape index: {}]
  %s2 = inlined_call_operand.vmem [shape: f32[1,128], index: 2, kind: input, shape index: {}]
  %s3 = inlined_call_operand.hbm [shape: f32[384,128], index: 3, kind: input, shape index: {}]
  %s4 = inlined_call_operand.vmem [shape: f32[1,128], index: 4, kind: input, shape index: {}]
  %s5 = inlined_call_operand.hbm [shape: f32[128,128], index: 5, kind: input, shape index: {}]
  %s6 = inlined_call_operand.vmem [shape: f32[1,128], index: 6, kind: input, shape index: {}]
  %s7 = inlined_call_operand.hbm [shape: f32[2,16,128], index: 7, kind: output, shape index: {}]
  %s8 = sld [smem:[#allocation0]]
  $region73: #{tpu_custom_call.1} parent=0
    _
  %s10 = ssub.s32 1, %s8
  %s11 = scalar_select 0, %s10, %s8
  $region1: #{tpu_custom_call.1} parent=0
    #allocation2 [shape = 'u8[196608]{0}', space=vmem, size = 0x30000, scoped, tag = 'input window, operand 1, single buffered']
    #allocation3 [shape = 's32[2]{0}', space=sflag, size = 0x8, scoped, tag = 'scoped memory for tpu_custom_call.1']
    #allocation4 [shape = 's32[2]{0}', space=sflag, size = 0x8, scoped, tag = 'scoped memory for tpu_custom_call.1']
    #allocation5 [shape = 'u8[196608]{0}', space=vmem, size = 0x30000, scoped, tag = 'input window, operand 3, single buffered']
    #allocation6 [shape = 's32[1]{0}', space=sflag, size = 0x4, scoped, tag = 'scoped memory for tpu_custom_call.1']
    #allocation7 [shape = 'u8[65536]{0}', space=vmem, size = 0x10000, scoped, tag = 'input window, operand 5, single buffered']
    #allocation8 [shape = 'u8[16384]{0}', space=vmem, size = 0x4000, scoped, tag = 'output window, operand 0']
    %12 = vsyncpa [#allocation3], 0
    %13 = vsyncpa [#allocation6], 0
    %14 = vsyncpa [#allocation4], 0
    %s15 = scalar_lea.sflag [#allocation4], 1
    %16 = vsyncpa %s15, 0
    loop: start=0, step=1, limit=4
    $region2: #{tpu_custom_call.1} parent=1 // loop_pre_header
      _
    $region3: #{tpu_custom_call.1} parent=1 // loop_header
      %s18 = sphi 0, %s22
      %p19 = scmp.ge.s32.totalorder %s18, 4
      %s28 = sphi 0, %s30
      %s31 = sphi 0, %s28
      %s32 = sphi 0, %s31
      %s48 = sphi 0, %s32
      %s52 = sphi 0, %s52
      %s54 = sphi 0, %s52
      %s55 = sphi 0, %s54
      %s69 = sphi 0, %s55
      %s73 = sphi 0, %s73
      %s75 = sphi 0, %s73
      %s76 = sphi 0, %s75
      %s90 = sphi 0, %s76
      %s94 = sphi 0, %s94
      %s96 = sphi 0, %s94
      %s97 = sphi 0, %s96
      %s111 = sphi 0, %s97
      %s115 = sphi 0, %s115
      %s117 = sphi 0, %s115
      %s118 = sphi 0, %s117
      %s132 = sphi 0, %s118
      %s136 = sphi 0, %s136
      %s138 = sphi 0, %s136
      %s139 = sphi 0, %s138
      %s153 = sphi 0, %s139
      %s157 = sphi 0, %s157
      %s159 = sphi 0, %s157
      %s160 = sphi 0, %s159
      %s174 = sphi 0, %s160
      %s180 = sphi 0, %s182
      %s183 = sphi 0, %s180
      %s184 = sphi 0, %s183
      %s200 = sphi 0, %s184
    $region4: #{tpu_custom_call.1} parent=1 // loop_header_branch
      %21 = sbr.rel (%p19) target = $region8
    $region5: #{tpu_custom_call.1} parent=1 // loop_body
      %s23 = ssub.s32 %s18, 1
      %s24 = ssub.s32 %s18, 2
      %s25 = sadd.s32 %s18, 1
      %s26 = ssub.s32 %s18, %s25
      %p27 = scmp.eq.s32.totalorder %s26, 0
      %s29 = sadd.s32 %s28, 1
      %s30 = scalar_select %p27, %s28, %s29
      %p33 = pneg %p27
      %p34 = scmp.eq.s32.totalorder %s18, 1
      %p35 = por %p33, %p34
      %p36 = scmp.ne.s32.totalorder %s28, %s31
      %p37 = scmp.eq.s32.totalorder %s18, 0
      %p38 = por %p36, %p37
      %p39 = scmp.ne.s32.totalorder %s28, %s31
      %p40 = scmp.eq.s32.totalorder %s23, 1
      %p41 = por %p39, %p40
      %p42 = scmp.ne.s32.totalorder %s31, %s32
      %p43 = scmp.eq.s32.totalorder %s23, 0
      %p44 = por %p42, %p43
      %p45 = scmp.ne.s32.totalorder %s31, %s32
      %p46 = scmp.eq.s32.totalorder %s24, 1
      %p47 = por %p45, %p46
      %p49 = scmp.ne.s32.totalorder %s32, %s48
      %p50 = scmp.eq.s32.totalorder %s24, 0
      %p51 = por %p49, %p50
      %s53 = sadd.s32 %s52, 1
      %p56 = scmp.eq.s32.totalorder %s18, 1
      %p57 = scmp.ne.s32.totalorder %s52, %s54
      %p58 = scmp.eq.s32.totalorder %s18, 0
      %p59 = por %p57, %p58
      %p60 = scmp.ne.s32.totalorder %s52, %s54
      %p61 = scmp.eq.s32.totalorder %s23, 1
      %p62 = por %p60, %p61
      %p63 = scmp.ne.s32.totalorder %s54, %s55
      %p64 = scmp.eq.s32.totalorder %s23, 0
      %p65 = por %p63, %p64
      %p66 = scmp.ne.s32.totalorder %s54, %s55
      %p67 = scmp.eq.s32.totalorder %s24, 1
      %p68 = por %p66, %p67
      %p70 = scmp.ne.s32.totalorder %s55, %s69
      %p71 = scmp.eq.s32.totalorder %s24, 0
      %p72 = por %p70, %p71
      %s74 = sadd.s32 %s73, 1
      %p77 = scmp.eq.s32.totalorder %s18, 1
      %p78 = scmp.ne.s32.totalorder %s73, %s75
      %p79 = scmp.eq.s32.totalorder %s18, 0
      %p80 = por %p78, %p79
      %p81 = scmp.ne.s32.totalorder %s73, %s75
      %p82 = scmp.eq.s32.totalorder %s23, 1
      %p83 = por %p81, %p82
      %p84 = scmp.ne.s32.totalorder %s75, %s76
      %p85 = scmp.eq.s32.totalorder %s23, 0
      %p86 = por %p84, %p85
      %p87 = scmp.ne.s32.totalorder %s75, %s76
      %p88 = scmp.eq.s32.totalorder %s24, 1
      %p89 = por %p87, %p88
      %p91 = scmp.ne.s32.totalorder %s76, %s90
      %p92 = scmp.eq.s32.totalorder %s24, 0
      %p93 = por %p91, %p92
      %s95 = sadd.s32 %s94, 1
      %p98 = scmp.eq.s32.totalorder %s18, 1
      %p99 = scmp.ne.s32.totalorder %s94, %s96
      %p100 = scmp.eq.s32.totalorder %s18, 0
      %p101 = por %p99, %p100
      %p102 = scmp.ne.s32.totalorder %s94, %s96
      %p103 = scmp.eq.s32.totalorder %s23, 1
      %p104 = por %p102, %p103
      %p105 = scmp.ne.s32.totalorder %s96, %s97
      %p106 = scmp.eq.s32.totalorder %s23, 0
      %p107 = por %p105, %p106
      %p108 = scmp.ne.s32.totalorder %s96, %s97
      %p109 = scmp.eq.s32.totalorder %s24, 1
      %p110 = por %p108, %p109
      %p112 = scmp.ne.s32.totalorder %s97, %s111
      %p113 = scmp.eq.s32.totalorder %s24, 0
      %p114 = por %p112, %p113
      %s116 = sadd.s32 %s115, 1
      %p119 = scmp.eq.s32.totalorder %s18, 1
      %p120 = scmp.ne.s32.totalorder %s115, %s117
      %p121 = scmp.eq.s32.totalorder %s18, 0
      %p122 = por %p120, %p121
      %p123 = scmp.ne.s32.totalorder %s115, %s117
      %p124 = scmp.eq.s32.totalorder %s23, 1
      %p125 = por %p123, %p124
      %p126 = scmp.ne.s32.totalorder %s117, %s118
      %p127 = scmp.eq.s32.totalorder %s23, 0
      %p128 = por %p126, %p127
      %p129 = scmp.ne.s32.totalorder %s117, %s118
      %p130 = scmp.eq.s32.totalorder %s24, 1
      %p131 = por %p129, %p130
      %p133 = scmp.ne.s32.totalorder %s118, %s132
      %p134 = scmp.eq.s32.totalorder %s24, 0
      %p135 = por %p133, %p134
      %s137 = sadd.s32 %s136, 1
      %p140 = scmp.eq.s32.totalorder %s18, 1
      %p141 = scmp.ne.s32.totalorder %s136, %s138
      %p142 = scmp.eq.s32.totalorder %s18, 0
      %p143 = por %p141, %p142
      %p144 = scmp.ne.s32.totalorder %s136, %s138
      %p145 = scmp.eq.s32.totalorder %s23, 1
      %p146 = por %p144, %p145
      %p147 = scmp.ne.s32.totalorder %s138, %s139
      %p148 = scmp.eq.s32.totalorder %s23, 0
      %p149 = por %p147, %p148
      %p150 = scmp.ne.s32.totalorder %s138, %s139
      %p151 = scmp.eq.s32.totalorder %s24, 1
      %p152 = por %p150, %p151
      %p154 = scmp.ne.s32.totalorder %s139, %s153
      %p155 = scmp.eq.s32.totalorder %s24, 0
      %p156 = por %p154, %p155
      %s158 = sadd.s32 %s157, 1
      %p161 = scmp.eq.s32.totalorder %s18, 1
      %p162 = scmp.ne.s32.totalorder %s157, %s159
      %p163 = scmp.eq.s32.totalorder %s18, 0
      %p164 = por %p162, %p163
      %p165 = scmp.ne.s32.totalorder %s157, %s159
      %p166 = scmp.eq.s32.totalorder %s23, 1
      %p167 = por %p165, %p166
      %p168 = scmp.ne.s32.totalorder %s159, %s160
      %p169 = scmp.eq.s32.totalorder %s23, 0
      %p170 = por %p168, %p169
      %p171 = scmp.ne.s32.totalorder %s159, %s160
      %p172 = scmp.eq.s32.totalorder %s24, 1
      %p173 = por %p171, %p172
      %p175 = scmp.ne.s32.totalorder %s160, %s174
      %p176 = scmp.eq.s32.totalorder %s24, 0
      %p177 = por %p175, %p176
      %s178 = ssub.s32 %s18, %s25
      %p179 = scmp.eq.s32.totalorder %s178, 0
      %s181 = sadd.s32 %s180, 1
      %s182 = scalar_select %p179, %s180, %s181
      %p185 = pneg %p179
      %p186 = scmp.eq.s32.totalorder %s18, 1
      %p187 = por %p185, %p186
      %p188 = scmp.ne.s32.totalorder %s180, %s183
      %p189 = scmp.eq.s32.totalorder %s18, 0
      %p190 = por %p188, %p189
      %p191 = scmp.ne.s32.totalorder %s180, %s183
      %p192 = scmp.eq.s32.totalorder %s23, 1
      %p193 = por %p191, %p192
      %p194 = scmp.ne.s32.totalorder %s183, %s184
      %p195 = scmp.eq.s32.totalorder %s23, 0
      %p196 = por %p194, %p195
      %p197 = scmp.ne.s32.totalorder %s183, %s184
      %p198 = scmp.eq.s32.totalorder %s24, 1
      %p199 = por %p197, %p198
      %p201 = scmp.ne.s32.totalorder %s184, %s200
      %p202 = scmp.eq.s32.totalorder %s24, 0
      %p203 = por %p201, %p202
      %p204 = scmp.le.s32.totalorder 1, %s18
      %p205 = scmp.lt.s32.totalorder %s18, 3
      %p206 = pnand %p204, %p205
      %p207 = pneg %p206
      // Predicated region
      $region9: #{tpu_custom_call.1} parent=5 // pred_check
        _
      $region10: #{tpu_custom_call.1} parent=5 // pred_check_branch
        %209 = sbr.rel (%p206) target = $region12
      $region11: #{tpu_custom_call.1} parent=5 // pred_region
        %s210 = ssub.s32 %s18, 1
        // Predicated region
        $region13: #{tpu_custom_call.1} parent=11 // pred_check
          %p211 = pneg %p65
        $region14: #{tpu_custom_call.1} parent=11 // pred_check_branch
          %213 = sbr.rel (%p211) target = $region16
        $region15: #{tpu_custom_call.1} parent=11 // pred_region
          %s215 = ssub.s32 6144, 6144
          %216 = vsyncadd [#allocation3], %s215
          %s217 = sshll.u32 [#allocation2], 4
          %s218 = int_to_ptr.vmem [resolvable:$true] %s217
          %223 = dma.hbm_to_vmem [thread:$0]  %s1, 6144, %s218, [#allocation3], 128, 128, 8
        $region16: #{tpu_custom_call.1} parent=11 // pred_fallthru
          _
        // Predicated region
        $region17: #{tpu_custom_call.1} parent=11 // pred_check
          %p224 = pneg %p86
        $region18: #{tpu_custom_call.1} parent=11 // pred_check_branch
          %226 = sbr.rel (%p224) target = $region20
        $region19: #{tpu_custom_call.1} parent=11 // pred_region
          _
        $region20: #{tpu_custom_call.1} parent=11 // pred_fallthru
          _
        // Predicated region
        $region21: #{tpu_custom_call.1} parent=11 // pred_check
          %p227 = pneg %p107
        $region22: #{tpu_custom_call.1} parent=11 // pred_check_branch
          %229 = sbr.rel (%p227) target = $region24
        $region23: #{tpu_custom_call.1} parent=11 // pred_region
          %s231 = ssub.s32 6144, 6144
          %232 = vsyncadd [#allocation6], %s231
          %s233 = sshll.u32 [#allocation5], 4
          %s234 = int_to_ptr.vmem [resolvable:$true] %s233
          %239 = dma.hbm_to_vmem [thread:$0]  %s3, 6144, %s234, [#allocation6], 128, 128, 8
        $region24: #{tpu_custom_call.1} parent=11 // pred_fallthru
          _
        // Predicated region
        $region25: #{tpu_custom_call.1} parent=11 // pred_check
          %p240 = pneg %p128
        $region26: #{tpu_custom_call.1} parent=11 // pred_check_branch
          %242 = sbr.rel (%p240) target = $region28
        $region27: #{tpu_custom_call.1} parent=11 // pred_region
          _
        $region28: #{tpu_custom_call.1} parent=11 // pred_fallthru
          _
        // Predicated region
        $region29: #{tpu_custom_call.1} parent=11 // pred_check
          %p243 = pneg %p149
        $region30: #{tpu_custom_call.1} parent=11 // pred_check_branch
          %245 = sbr.rel (%p243) target = $region32
        $region31: #{tpu_custom_call.1} parent=11 // pred_region
          %s247 = ssub.s32 2048, 2048
          %248 = vsyncadd [#allocation6], %s247
          %s249 = sshll.u32 [#allocation7], 4
          %s250 = int_to_ptr.vmem [resolvable:$true] %s249
          %255 = dma.hbm_to_vmem [thread:$0]  %s5, 2048, %s250, [#allocation6], 128, 128, 8
        $region32: #{tpu_custom_call.1} parent=11 // pred_fallthru
          _
        // Predicated region
        $region33: #{tpu_custom_call.1} parent=11 // pred_check
          %p256 = pneg %p170
        $region34: #{tpu_custom_call.1} parent=11 // pred_check_branch
          %258 = sbr.rel (%p256) target = $region36
        $region35: #{tpu_custom_call.1} parent=11 // pred_region
          _
        $region36: #{tpu_custom_call.1} parent=11 // pred_fallthru
          _
      $region12: #{tpu_custom_call.1} parent=5 // pred_fallthru
        _
      %p259 = scmp.lt.s32.totalorder %s18, 2
      // Predicated region
      $region37: #{tpu_custom_call.1} parent=5 // pred_check
        %p260 = pneg %p259
      $region38: #{tpu_custom_call.1} parent=5 // pred_check_branch
        %262 = sbr.rel (%p260) target = $region40
      $region39: #{tpu_custom_call.1} parent=5 // pred_region
        // Predicated region
        $region41: #{tpu_custom_call.1} parent=39 // pred_check
          %p263 = pneg %p38
        $region42: #{tpu_custom_call.1} parent=39 // pred_check_branch
          %265 = sbr.rel (%p263) target = $region44
        $region43: #{tpu_custom_call.1} parent=39 // pred_region
          %p266 = scmp.lt.s32.totalorder %s18, 1
          %s267 = scalar_select %p266, %s18, 1
          %s268 = smul.addr %s267, 2
          %s269 = smul.addr %s268, 8
          %s270 = scalar_lea.vmem %s0, %s269
        $region44: #{tpu_custom_call.1} parent=39 // pred_fallthru
          _
      $region40: #{tpu_custom_call.1} parent=5 // pred_fallthru
        _
      %p271 = scmp.le.s32.totalorder 1, %s18
      %p272 = scmp.lt.s32.totalorder %s18, 3
      %p273 = pnand %p271, %p272
      %p274 = pneg %p273
      // Predicated region
      $region45: #{tpu_custom_call.1} parent=5 // pred_check
        _
      $region46: #{tpu_custom_call.1} parent=5 // pred_check_branch
        %276 = sbr.rel (%p273) target = $region48
      $region47: #{tpu_custom_call.1} parent=5 // pred_region
        %s277 = ssub.s32 %s18, 1
        // Predicated region
        $region49: #{tpu_custom_call.1} parent=47 // pred_check
          %p278 = pneg %p65
        $region50: #{tpu_custom_call.1} parent=47 // pred_check_branch
          %280 = sbr.rel (%p278) target = $region52
        $region51: #{tpu_custom_call.1} parent=47 // pred_region
          %281 = dma.done [#allocation3], 6144
        $region52: #{tpu_custom_call.1} parent=47 // pred_fallthru
          _
        // Predicated region
        $region53: #{tpu_custom_call.1} parent=47 // pred_check
          %p282 = pneg %p107
        $region54: #{tpu_custom_call.1} parent=47 // pred_check_branch
          %284 = sbr.rel (%p282) target = $region56
        $region55: #{tpu_custom_call.1} parent=47 // pred_region
          %285 = dma.done [#allocation6], 6144
        $region56: #{tpu_custom_call.1} parent=47 // pred_fallthru
          _
        // Predicated region
        $region57: #{tpu_custom_call.1} parent=47 // pred_check
          %p286 = pneg %p149
        $region58: #{tpu_custom_call.1} parent=47 // pred_check_branch
          %288 = sbr.rel (%p286) target = $region60
        $region59: #{tpu_custom_call.1} parent=47 // pred_region
          %289 = dma.done [#allocation6], 2048
        $region60: #{tpu_custom_call.1} parent=47 // pred_fallthru
          _
        %p290 = scmp.lt.s32.totalorder %s23, 1
        %s291 = scalar_select %p290, %s23, 1
        %s292 = smul.addr %s291, 2
        %s293 = smul.addr %s292, 8
        %s294 = scalar_lea.vmem %s0, %s293
        %p295 = pneg %p44
        %p296 = pneg %p41
        %p297 = pneg %p65
        %p298 = pneg %p62
        %p299 = pneg %p86
        %p300 = pneg %p83
        %p301 = pneg %p107
        %p302 = pneg %p104
        %p303 = pneg %p128
        %p304 = pneg %p125
        %p305 = pneg %p149
        %p306 = pneg %p146
        %p307 = pneg %p170
        %p308 = pneg %p167
        %p309 = pneg %p196
        %p310 = pneg %p193
        %s311 = sand.u32 %s183, 1
        %s312 = scalar_lea.sflag [#allocation4], %s311
        %s313 = sand.u32 %s183, 1
        %s314 = smul.addr %s313, 16
        %s315 = scalar_lea.vmem [#allocation8], %s314
        %p316 = scmp.lt.s32.totalorder %s23, 1
        %s317 = scalar_select %p316, %s23, 1
        %s318 = smul.addr %s317, 2
        %s319 = smul.addr %s318, 8
        %s320 = scalar_lea.vmem %s0, %s319
        %v321 = vld [vmem:[%s320] sm:$0xff]
        %v322 = vld [vmem:[%s320 + $0x8] sm:$0xff]
        %vm323 = vcmask 31744
        %v324 = vsel %vm323, %v321, 0.0
        %v325 = vsel %vm323, %v322, 0.0
        %v326 = vlaneseq
        %v327 = vshrl.u32 %v326, 7
        %v328 = vadd.s32 %v327, 8
        %v329 = vrot.slane %v324, 7
        %v330 = vrot.slane %v325, 7
        %vm331 = vcmp.lt.s32.totalorder %v327, 1
        %v332 = vsel %vm331, %v329, %v330
        %v333 = vsel %vm331, %v330, %v329
        %vm334 = vcmp.ge.s32.totalorder %v327, 1
        %vm335 = vcmp.ge.s32.totalorder %v328, 1
        %vm336 = vcmp.lt.s32.totalorder %v327, 17
        %vm337 = vcmp.lt.s32.totalorder %v328, 17
        %vm338 = vmand %vm334, %vm336
        %vm339 = vmand %vm335, %vm337
        %v340 = vsel %vm338, 1, 0
        %v341 = vsel %vm339, 1, 0
        %vm342 = vcmp.eq.s32.totalorder %v340, 1
        %vm343 = vcmp.eq.s32.totalorder %v341, 1
        %v344 = vsel %vm342, %v333, 0.0
        %v345 = vsel %vm343, %v332, 0.0
        %v346 = vrot.slane %v324, 1
        %v347 = vrot.slane %v325, 1
        %vm348 = vcmp.lt.s32.totalorder %v327, 7
        %v349 = vsel %vm348, %v346, %v347
        %v350 = vsel %vm348, %v347, %v346
        %vm351 = vcmp.ge.s32.totalorder %v327, 4294967295
        %vm352 = vcmp.ge.s32.totalorder %v328, 4294967295
        %vm353 = vcmp.lt.s32.totalorder %v327, 15
        %vm354 = vcmp.lt.s32.totalorder %v328, 15
        %vm355 = vmand %vm351, %vm353
        %vm356 = vmand %vm352, %vm354
        %v357 = vsel %vm355, 1, 0
        %v358 = vsel %vm356, 1, 0
        %vm359 = vcmp.eq.s32.totalorder %v357, 1
        %vm360 = vcmp.eq.s32.totalorder %v358, 1
        %v361 = vsel %vm359, %v349, 0.0
        %v362 = vsel %vm360, %v350, 0.0
        %v363 = vld [vmem:[#allocation2] sm:$0xff]
        %v364 = vld [vmem:[#allocation2 + $0x8] sm:$0xff]
        %v365 = vld [vmem:[#allocation2 + $0x10] sm:$0xff]
        %v366 = vld [vmem:[#allocation2 + $0x18] sm:$0xff]
        %v367 = vld [vmem:[#allocation2 + $0x20] sm:$0xff]
        %v368 = vld [vmem:[#allocation2 + $0x28] sm:$0xff]
        %v369 = vld [vmem:[#allocation2 + $0x30] sm:$0xff]
        %v370 = vld [vmem:[#allocation2 + $0x38] sm:$0xff]
        %v371 = vld [vmem:[#allocation2 + $0x40] sm:$0xff]
        %v372 = vld [vmem:[#allocation2 + $0x48] sm:$0xff]
        %v373 = vld [vmem:[#allocation2 + $0x50] sm:$0xff]
        %v374 = vld [vmem:[#allocation2 + $0x58] sm:$0xff]
        %v375 = vld [vmem:[#allocation2 + $0x60] sm:$0xff]
        %v376 = vld [vmem:[#allocation2 + $0x68] sm:$0xff]
        %v377 = vld [vmem:[#allocation2 + $0x70] sm:$0xff]
        %v378 = vld [vmem:[#allocation2 + $0x78] sm:$0xff]
        %v379 = vld [vmem:[#allocation2 + $0x80] sm:$0xff]
        %v380 = vld [vmem:[#allocation2 + $0x88] sm:$0xff]
        %v381 = vld [vmem:[#allocation2 + $0x90] sm:$0xff]
        %v382 = vld [vmem:[#allocation2 + $0x98] sm:$0xff]
        %v383 = vld [vmem:[#allocation2 + $0xa0] sm:$0xff]
        %v384 = vld [vmem:[#allocation2 + $0xa8] sm:$0xff]
        %v385 = vld [vmem:[#allocation2 + $0xb0] sm:$0xff]
        %v386 = vld [vmem:[#allocation2 + $0xb8] sm:$0xff]
        %v387 = vld [vmem:[#allocation2 + $0xc0] sm:$0xff]
        %v388 = vld [vmem:[#allocation2 + $0xc8] sm:$0xff]
        %v389 = vld [vmem:[#allocation2 + $0xd0] sm:$0xff]
        %v390 = vld [vmem:[#allocation2 + $0xd8] sm:$0xff]
        %v391 = vld [vmem:[#allocation2 + $0xe0] sm:$0xff]
        %v392 = vld [vmem:[#allocation2 + $0xe8] sm:$0xff]
        %v393 = vld [vmem:[#allocation2 + $0xf0] sm:$0xff]
        %v394 = vld [vmem:[#allocation2 + $0xf8] sm:$0xff]
        %v395 = vld [vmem:[#allocation2 + $0x100] sm:$0xff]
        %v396 = vld [vmem:[#allocation2 + $0x108] sm:$0xff]
        %v397 = vld [vmem:[#allocation2 + $0x110] sm:$0xff]
        %v398 = vld [vmem:[#allocation2 + $0x118] sm:$0xff]
        %v399 = vld [vmem:[#allocation2 + $0x120] sm:$0xff]
        %v400 = vld [vmem:[#allocation2 + $0x128] sm:$0xff]
        %v401 = vld [vmem:[#allocation2 + $0x130] sm:$0xff]
        %v402 = vld [vmem:[#allocation2 + $0x138] sm:$0xff]
        %v403 = vld [vmem:[#allocation2 + $0x140] sm:$0xff]
        %v404 = vld [vmem:[#allocation2 + $0x148] sm:$0xff]
        %v405 = vld [vmem:[#allocation2 + $0x150] sm:$0xff]
        %v406 = vld [vmem:[#allocation2 + $0x158] sm:$0xff]
        %v407 = vld [vmem:[#allocation2 + $0x160] sm:$0xff]
        %v408 = vld [vmem:[#allocation2 + $0x168] sm:$0xff]
        %v409 = vld [vmem:[#allocation2 + $0x170] sm:$0xff]
        %v410 = vld [vmem:[#allocation2 + $0x178] sm:$0xff]
        %v411 = vld [vmem:[%s2] sm:$0x1]
        %v413 = vlaneseq
        %v414 = vshrl.u32 %v413, 7
        %v415 = vsub.s32 0, %v414
        %v416 = vrot.slane %v411, %v415
        %418 = vmatprep.subr.mxu0 0.0
        %419 = vmatpush1.msra.mxu0 %v363
        %420 = vmatprep.subr.mxu0 0.0
        %421 = vmatpush1.msra.mxu0 %v364
        %422 = vmatprep.subr.mxu0 0.0
        %423 = vmatpush1.msra.mxu0 %v365
        %424 = vmatprep.subr.mxu0 0.0
        %425 = vmatpush1.msra.mxu0 %v366
        %426 = vmatprep.subr.mxu0 0.0
        %427 = vmatpush1.msra.mxu0 %v367
        %428 = vmatprep.subr.mxu0 0.0
        %429 = vmatpush1.msra.mxu0 %v368
        %430 = vmatprep.subr.mxu0 0.0
        %431 = vmatpush1.msra.mxu0 %v369
        %432 = vmatprep.subr.mxu0 0.0
        %433 = vmatpush1.msra.mxu0 %v370
        %434 = vmatprep.subr.mxu0 0.0
        %435 = vmatpush1.msra.mxu0 %v371
        %436 = vmatprep.subr.mxu0 0.0
        %437 = vmatpush1.msra.mxu0 %v372
        %438 = vmatprep.subr.mxu0 0.0
        %439 = vmatpush1.msra.mxu0 %v373
        %440 = vmatprep.subr.mxu0 0.0
        %441 = vmatpush1.msra.mxu0 %v374
        %442 = vmatprep.subr.mxu0 0.0
        %443 = vmatpush1.msra.mxu0 %v375
        %444 = vmatprep.subr.mxu0 0.0
        %445 = vmatpush1.msra.mxu0 %v376
        %446 = vmatprep.subr.mxu0 0.0
        %447 = vmatpush1.msra.mxu0 %v377
        %448 = vmatprep.subr.mxu0 0.0
        %449 = vmatpush1.msra.mxu0 %v378
        %450 = vmatprep.subr.mxu0 0.0
        %451 = vmatpush1.msra.mxu0 %v379
        %452 = vmatprep.subr.mxu0 0.0
        %453 = vmatpush1.msra.mxu0 %v380
        %454 = vmatprep.subr.mxu0 0.0
        %455 = vmatpush1.msra.mxu0 %v381
        %456 = vmatprep.subr.mxu0 0.0
        %457 = vmatpush1.msra.mxu0 %v382
        %458 = vmatprep.subr.mxu0 0.0
        %459 = vmatpush1.msra.mxu0 %v383
        %460 = vmatprep.subr.mxu0 0.0
        %461 = vmatpush1.msra.mxu0 %v384
        %462 = vmatprep.subr.mxu0 0.0
        %463 = vmatpush1.msra.mxu0 %v385
        %464 = vmatprep.subr.mxu0 0.0
        %465 = vmatpush1.msra.mxu0 %v386
        %466 = vmatprep.subr.mxu0 0.0
        %467 = vmatpush1.msra.mxu0 %v387
        %468 = vmatprep.subr.mxu0 0.0
        %469 = vmatpush1.msra.mxu0 %v388
        %470 = vmatprep.subr.mxu0 0.0
        %471 = vmatpush1.msra.mxu0 %v389
        %472 = vmatprep.subr.mxu0 0.0
        %473 = vmatpush1.msra.mxu0 %v390
        %474 = vmatprep.subr.mxu0 0.0
        %475 = vmatpush1.msra.mxu0 %v391
        %476 = vmatprep.subr.mxu0 0.0
        %477 = vmatpush1.msra.mxu0 %v392
        %478 = vmatprep.subr.mxu0 0.0
        %479 = vmatpush1.msra.mxu0 %v393
        %480 = vmatprep.subr.mxu0 0.0
        %481 = vmatpush1.msra.mxu0 %v394
        %482 = vmatprep.mubr.f32.mxu0 %v324
        %483 = vmatmul.mubr.f32.gmra.mrb[0].mxu0 %v344
        %v484 = vpop.f32.mrb[0].mxu0
        %v485 = vadd.f32 %v416, %v484
        %v486 = vpop.f32.mrb[0].mxu0
        %487 = vmatprep.mubr.f32.mxu0 %v325
        %488 = vmatmul.mubr.f32.gmra.mrb[0].mxu0 %v345
        %v489 = vpop.f32.mrb[0].mxu0
        %v490 = vadd.f32 %v416, %v489
        %v491 = vpop.f32.mrb[0].mxu0
        %492 = vdwg.mxu0
        %493 = vmatprep.subr.mxu0 0.0
        %494 = vmatpush1.msra.mxu0 %v395
        %495 = vmatprep.subr.mxu0 0.0
        %496 = vmatpush1.msra.mxu0 %v396
        %497 = vmatprep.subr.mxu0 0.0
        %498 = vmatpush1.msra.mxu0 %v397
        %499 = vmatprep.subr.mxu0 0.0
        %500 = vmatpush1.msra.mxu0 %v398
        %501 = vmatprep.subr.mxu0 0.0
        %502 = vmatpush1.msra.mxu0 %v399
        %503 = vmatprep.subr.mxu0 0.0
        %504 = vmatpush1.msra.mxu0 %v400
        %505 = vmatprep.subr.mxu0 0.0
        %506 = vmatpush1.msra.mxu0 %v401
        %507 = vmatprep.subr.mxu0 0.0
        %508 = vmatpush1.msra.mxu0 %v402
        %509 = vmatprep.subr.mxu0 0.0
        %510 = vmatpush1.msra.mxu0 %v403
        %511 = vmatprep.subr.mxu0 0.0
        %512 = vmatpush1.msra.mxu0 %v404
        %513 = vmatprep.subr.mxu0 0.0
        %514 = vmatpush1.msra.mxu0 %v405
        %515 = vmatprep.subr.mxu0 0.0
        %516 = vmatpush1.msra.mxu0 %v406
        %517 = vmatprep.subr.mxu0 0.0
        %518 = vmatpush1.msra.mxu0 %v407
        %519 = vmatprep.subr.mxu0 0.0
        %520 = vmatpush1.msra.mxu0 %v408
        %521 = vmatprep.subr.mxu0 0.0
        %522 = vmatpush1.msra.mxu0 %v409
        %523 = vmatprep.subr.mxu0 0.0
        %524 = vmatpush1.msra.mxu0 %v410
        %525 = vmatprep.subr.mxu0 0.0
        %526 = vmatpush1.msra.mxu0 0.0
        %527 = vmatprep.subr.mxu0 0.0
        %528 = vmatpush1.msra.mxu0 0.0
        %529 = vmatprep.subr.mxu0 0.0
        %530 = vmatpush1.msra.mxu0 0.0
        %531 = vmatprep.subr.mxu0 0.0
        %532 = vmatpush1.msra.mxu0 0.0
        %533 = vmatprep.subr.mxu0 0.0
        %534 = vmatpush1.msra.mxu0 0.0
        %535 = vmatprep.subr.mxu0 0.0
        %536 = vmatpush1.msra.mxu0 0.0
        %537 = vmatprep.subr.mxu0 0.0
        %538 = vmatpush1.msra.mxu0 0.0
        %539 = vmatprep.subr.mxu0 0.0
        %540 = vmatpush1.msra.mxu0 0.0
        %541 = vmatprep.subr.mxu0 0.0
        %542 = vmatpush1.msra.mxu0 0.0
        %543 = vmatprep.subr.mxu0 0.0
        %544 = vmatpush1.msra.mxu0 0.0
        %545 = vmatprep.subr.mxu0 0.0
        %546 = vmatpush1.msra.mxu0 0.0
        %547 = vmatprep.subr.mxu0 0.0
        %548 = vmatpush1.msra.mxu0 0.0
        %549 = vmatprep.subr.mxu0 0.0
        %550 = vmatpush1.msra.mxu0 0.0
        %551 = vmatprep.subr.mxu0 0.0
        %552 = vmatpush1.msra.mxu0 0.0
        %553 = vmatprep.subr.mxu0 0.0
        %554 = vmatpush1.msra.mxu0 0.0
        %555 = vmatprep.subr.mxu0 0.0
        %556 = vmatpush1.msra.mxu0 0.0
        %557 = vmatprep.mubr.f32.mxu0 0.0
        %558 = vmatmul.mubr.f32.gmra.mrb[0].mxu0 %v361
        %v559 = vpop.f32.mrb[0].mxu0
        %v560 = vadd.f32 %v485, %v559
        %v561 = vpop.f32.mrb[0].mxu0
        %562 = vmatprep.mubr.f32.mxu0 0.0
        %563 = vmatmul.mubr.f32.gmra.mrb[0].mxu0 %v362
        %v564 = vpop.f32.mrb[0].mxu0
        %v565 = vadd.f32 %v490, %v564
        %v566 = vpop.f32.mrb[0].mxu0
        %567 = vdwg.mxu0
        %v568 = vmax.f32 %v560, 0.0
        %v569 = vmax.f32 %v565, 0.0
        %v570 = vrot.slane %v568, 7
        %v571 = vrot.slane %v569, 7
        %v572 = vsel %vm331, %v570, %v571
        %v573 = vsel %vm331, %v571, %v570
        %v574 = vsel %vm342, %v573, 0.0
        %v575 = vsel %vm343, %v572, 0.0
        %v576 = vrot.slane %v568, 1
        %v577 = vrot.slane %v569, 1
        %v578 = vsel %vm348, %v576, %v577
        %v579 = vsel %vm348, %v577, %v576
        %v580 = vsel %vm359, %v578, 0.0
        %v581 = vsel %vm360, %v579, 0.0
        %v582 = vld [vmem:[#allocation5] sm:$0xff]
        %v583 = vld [vmem:[#allocation5 + $0x8] sm:$0xff]
        %v584 = vld [vmem:[#allocation5 + $0x10] sm:$0xff]
        %v585 = vld [vmem:[#allocation5 + $0x18] sm:$0xff]
        %v586 = vld [vmem:[#allocation5 + $0x20] sm:$0xff]
        %v587 = vld [vmem:[#allocation5 + $0x28] sm:$0xff]
        %v588 = vld [vmem:[#allocation5 + $0x30] sm:$0xff]
        %v589 = vld [vmem:[#allocation5 + $0x38] sm:$0xff]
        %v590 = vld [vmem:[#allocation5 + $0x40] sm:$0xff]
        %v591 = vld [vmem:[#allocation5 + $0x48] sm:$0xff]
        %v592 = vld [vmem:[#allocation5 + $0x50] sm:$0xff]
        %v593 = vld [vmem:[#allocation5 + $0x58] sm:$0xff]
        %v594 = vld [vmem:[#allocation5 + $0x60] sm:$0xff]
        %v595 = vld [vmem:[#allocation5 + $0x68] sm:$0xff]
        %v596 = vld [vmem:[#allocation5 + $0x70] sm:$0xff]
        %v597 = vld [vmem:[#allocation5 + $0x78] sm:$0xff]
        %v598 = vld [vmem:[#allocation5 + $0x80] sm:$0xff]
        %v599 = vld [vmem:[#allocation5 + $0x88] sm:$0xff]
        %v600 = vld [vmem:[#allocation5 + $0x90] sm:$0xff]
        %v601 = vld [vmem:[#allocation5 + $0x98] sm:$0xff]
        %v602 = vld [vmem:[#allocation5 + $0xa0] sm:$0xff]
        %v603 = vld [vmem:[#allocation5 + $0xa8] sm:$0xff]
        %v604 = vld [vmem:[#allocation5 + $0xb0] sm:$0xff]
        %v605 = vld [vmem:[#allocation5 + $0xb8] sm:$0xff]
        %v606 = vld [vmem:[#allocation5 + $0xc0] sm:$0xff]
        %v607 = vld [vmem:[#allocation5 + $0xc8] sm:$0xff]
        %v608 = vld [vmem:[#allocation5 + $0xd0] sm:$0xff]
        %v609 = vld [vmem:[#allocation5 + $0xd8] sm:$0xff]
        %v610 = vld [vmem:[#allocation5 + $0xe0] sm:$0xff]
        %v611 = vld [vmem:[#allocation5 + $0xe8] sm:$0xff]
        %v612 = vld [vmem:[#allocation5 + $0xf0] sm:$0xff]
        %v613 = vld [vmem:[#allocation5 + $0xf8] sm:$0xff]
        %v614 = vld [vmem:[#allocation5 + $0x100] sm:$0xff]
        %v615 = vld [vmem:[#allocation5 + $0x108] sm:$0xff]
        %v616 = vld [vmem:[#allocation5 + $0x110] sm:$0xff]
        %v617 = vld [vmem:[#allocation5 + $0x118] sm:$0xff]
        %v618 = vld [vmem:[#allocation5 + $0x120] sm:$0xff]
        %v619 = vld [vmem:[#allocation5 + $0x128] sm:$0xff]
        %v620 = vld [vmem:[#allocation5 + $0x130] sm:$0xff]
        %v621 = vld [vmem:[#allocation5 + $0x138] sm:$0xff]
        %v622 = vld [vmem:[#allocation5 + $0x140] sm:$0xff]
        %v623 = vld [vmem:[#allocation5 + $0x148] sm:$0xff]
        %v624 = vld [vmem:[#allocation5 + $0x150] sm:$0xff]
        %v625 = vld [vmem:[#allocation5 + $0x158] sm:$0xff]
        %v626 = vld [vmem:[#allocation5 + $0x160] sm:$0xff]
        %v627 = vld [vmem:[#allocation5 + $0x168] sm:$0xff]
        %v628 = vld [vmem:[#allocation5 + $0x170] sm:$0xff]
        %v629 = vld [vmem:[#allocation5 + $0x178] sm:$0xff]
        %v630 = vld [vmem:[%s4] sm:$0x1]
        %v632 = vlaneseq
        %v633 = vshrl.u32 %v632, 7
        %v634 = vsub.s32 0, %v633
        %v635 = vrot.slane %v630, %v634
        %637 = vmatprep.subr.mxu0 0.0
        %638 = vmatpush1.msra.mxu0 %v582
        %639 = vmatprep.subr.mxu0 0.0
        %640 = vmatpush1.msra.mxu0 %v583
        %641 = vmatprep.subr.mxu0 0.0
        %642 = vmatpush1.msra.mxu0 %v584
        %643 = vmatprep.subr.mxu0 0.0
        %644 = vmatpush1.msra.mxu0 %v585
        %645 = vmatprep.subr.mxu0 0.0
        %646 = vmatpush1.msra.mxu0 %v586
        %647 = vmatprep.subr.mxu0 0.0
        %648 = vmatpush1.msra.mxu0 %v587
        %649 = vmatprep.subr.mxu0 0.0
        %650 = vmatpush1.msra.mxu0 %v588
        %651 = vmatprep.subr.mxu0 0.0
        %652 = vmatpush1.msra.mxu0 %v589
        %653 = vmatprep.subr.mxu0 0.0
        %654 = vmatpush1.msra.mxu0 %v590
        %655 = vmatprep.subr.mxu0 0.0
        %656 = vmatpush1.msra.mxu0 %v591
        %657 = vmatprep.subr.mxu0 0.0
        %658 = vmatpush1.msra.mxu0 %v592
        %659 = vmatprep.subr.mxu0 0.0
        %660 = vmatpush1.msra.mxu0 %v593
        %661 = vmatprep.subr.mxu0 0.0
        %662 = vmatpush1.msra.mxu0 %v594
        %663 = vmatprep.subr.mxu0 0.0
        %664 = vmatpush1.msra.mxu0 %v595
        %665 = vmatprep.subr.mxu0 0.0
        %666 = vmatpush1.msra.mxu0 %v596
        %667 = vmatprep.subr.mxu0 0.0
        %668 = vmatpush1.msra.mxu0 %v597
        %669 = vmatprep.subr.mxu0 0.0
        %670 = vmatpush1.msra.mxu0 %v598
        %671 = vmatprep.subr.mxu0 0.0
        %672 = vmatpush1.msra.mxu0 %v599
        %673 = vmatprep.subr.mxu0 0.0
        %674 = vmatpush1.msra.mxu0 %v600
        %675 = vmatprep.subr.mxu0 0.0
        %676 = vmatpush1.msra.mxu0 %v601
        %677 = vmatprep.subr.mxu0 0.0
        %678 = vmatpush1.msra.mxu0 %v602
        %679 = vmatprep.subr.mxu0 0.0
        %680 = vmatpush1.msra.mxu0 %v603
        %681 = vmatprep.subr.mxu0 0.0
        %682 = vmatpush1.msra.mxu0 %v604
        %683 = vmatprep.subr.mxu0 0.0
        %684 = vmatpush1.msra.mxu0 %v605
        %685 = vmatprep.subr.mxu0 0.0
        %686 = vmatpush1.msra.mxu0 %v606
        %687 = vmatprep.subr.mxu0 0.0
        %688 = vmatpush1.msra.mxu0 %v607
        %689 = vmatprep.subr.mxu0 0.0
        %690 = vmatpush1.msra.mxu0 %v608
        %691 = vmatprep.subr.mxu0 0.0
        %692 = vmatpush1.msra.mxu0 %v609
        %693 = vmatprep.subr.mxu0 0.0
        %694 = vmatpush1.msra.mxu0 %v610
        %695 = vmatprep.subr.mxu0 0.0
        %696 = vmatpush1.msra.mxu0 %v611
        %697 = vmatprep.subr.mxu0 0.0
        %698 = vmatpush1.msra.mxu0 %v612
        %699 = vmatprep.subr.mxu0 0.0
        %700 = vmatpush1.msra.mxu0 %v613
        %701 = vmatprep.mubr.f32.mxu0 %v568
        %702 = vmatmul.mubr.f32.gmra.mrb[0].mxu0 %v574
        %v703 = vpop.f32.mrb[0].mxu0
        %v704 = vadd.f32 %v635, %v703
        %v705 = vpop.f32.mrb[0].mxu0
        %706 = vmatprep.mubr.f32.mxu0 %v569
        %707 = vmatmul.mubr.f32.gmra.mrb[0].mxu0 %v575
        %v708 = vpop.f32.mrb[0].mxu0
        %v709 = vadd.f32 %v635, %v708
        %v710 = vpop.f32.mrb[0].mxu0
        %711 = vdwg.mxu0
        %712 = vmatprep.subr.mxu0 0.0
        %713 = vmatpush1.msra.mxu0 %v614
        %714 = vmatprep.subr.mxu0 0.0
        %715 = vmatpush1.msra.mxu0 %v615
        %716 = vmatprep.subr.mxu0 0.0
        %717 = vmatpush1.msra.mxu0 %v616
        %718 = vmatprep.subr.mxu0 0.0
        %719 = vmatpush1.msra.mxu0 %v617
        %720 = vmatprep.subr.mxu0 0.0
        %721 = vmatpush1.msra.mxu0 %v618
        %722 = vmatprep.subr.mxu0 0.0
        %723 = vmatpush1.msra.mxu0 %v619
        %724 = vmatprep.subr.mxu0 0.0
        %725 = vmatpush1.msra.mxu0 %v620
        %726 = vmatprep.subr.mxu0 0.0
        %727 = vmatpush1.msra.mxu0 %v621
        %728 = vmatprep.subr.mxu0 0.0
        %729 = vmatpush1.msra.mxu0 %v622
        %730 = vmatprep.subr.mxu0 0.0
        %731 = vmatpush1.msra.mxu0 %v623
        %732 = vmatprep.subr.mxu0 0.0
        %733 = vmatpush1.msra.mxu0 %v624
        %734 = vmatprep.subr.mxu0 0.0
        %735 = vmatpush1.msra.mxu0 %v625
        %736 = vmatprep.subr.mxu0 0.0
        %737 = vmatpush1.msra.mxu0 %v626
        %738 = vmatprep.subr.mxu0 0.0
        %739 = vmatpush1.msra.mxu0 %v627
        %740 = vmatprep.subr.mxu0 0.0
        %741 = vmatpush1.msra.mxu0 %v628
        %742 = vmatprep.subr.mxu0 0.0
        %743 = vmatpush1.msra.mxu0 %v629
        %744 = vmatprep.subr.mxu0 0.0
        %745 = vmatpush1.msra.mxu0 0.0
        %746 = vmatprep.subr.mxu0 0.0
        %747 = vmatpush1.msra.mxu0 0.0
        %748 = vmatprep.subr.mxu0 0.0
        %749 = vmatpush1.msra.mxu0 0.0
        %750 = vmatprep.subr.mxu0 0.0
        %751 = vmatpush1.msra.mxu0 0.0
        %752 = vmatprep.subr.mxu0 0.0
        %753 = vmatpush1.msra.mxu0 0.0
        %754 = vmatprep.subr.mxu0 0.0
        %755 = vmatpush1.msra.mxu0 0.0
        %756 = vmatprep.subr.mxu0 0.0
        %757 = vmatpush1.msra.mxu0 0.0
        %758 = vmatprep.subr.mxu0 0.0
        %759 = vmatpush1.msra.mxu0 0.0
        %760 = vmatprep.subr.mxu0 0.0
        %761 = vmatpush1.msra.mxu0 0.0
        %762 = vmatprep.subr.mxu0 0.0
        %763 = vmatpush1.msra.mxu0 0.0
        %764 = vmatprep.subr.mxu0 0.0
        %765 = vmatpush1.msra.mxu0 0.0
        %766 = vmatprep.subr.mxu0 0.0
        %767 = vmatpush1.msra.mxu0 0.0
        %768 = vmatprep.subr.mxu0 0.0
        %769 = vmatpush1.msra.mxu0 0.0
        %770 = vmatprep.subr.mxu0 0.0
        %771 = vmatpush1.msra.mxu0 0.0
        %772 = vmatprep.subr.mxu0 0.0
        %773 = vmatpush1.msra.mxu0 0.0
        %774 = vmatprep.subr.mxu0 0.0
        %775 = vmatpush1.msra.mxu0 0.0
        %776 = vmatprep.mubr.f32.mxu0 0.0
        %777 = vmatmul.mubr.f32.gmra.mrb[0].mxu0 %v580
        %v778 = vpop.f32.mrb[0].mxu0
        %v779 = vadd.f32 %v704, %v778
        %v780 = vpop.f32.mrb[0].mxu0
        %781 = vmatprep.mubr.f32.mxu0 0.0
        %782 = vmatmul.mubr.f32.gmra.mrb[0].mxu0 %v581
        %v783 = vpop.f32.mrb[0].mxu0
        %v784 = vadd.f32 %v709, %v783
        %v785 = vpop.f32.mrb[0].mxu0
        %786 = vdwg.mxu0
        %v787 = vld [vmem:[#allocation7] sm:$0xff]
        %v788 = vld [vmem:[#allocation7 + $0x8] sm:$0xff]
        %v789 = vld [vmem:[#allocation7 + $0x10] sm:$0xff]
        %v790 = vld [vmem:[#allocation7 + $0x18] sm:$0xff]
        %v791 = vld [vmem:[#allocation7 + $0x20] sm:$0xff]
        %v792 = vld [vmem:[#allocation7 + $0x28] sm:$0xff]
        %v793 = vld [vmem:[#allocation7 + $0x30] sm:$0xff]
        %v794 = vld [vmem:[#allocation7 + $0x38] sm:$0xff]
        %v795 = vld [vmem:[#allocation7 + $0x40] sm:$0xff]
        %v796 = vld [vmem:[#allocation7 + $0x48] sm:$0xff]
        %v797 = vld [vmem:[#allocation7 + $0x50] sm:$0xff]
        %v798 = vld [vmem:[#allocation7 + $0x58] sm:$0xff]
        %v799 = vld [vmem:[#allocation7 + $0x60] sm:$0xff]
        %v800 = vld [vmem:[#allocation7 + $0x68] sm:$0xff]
        %v801 = vld [vmem:[#allocation7 + $0x70] sm:$0xff]
        %v802 = vld [vmem:[#allocation7 + $0x78] sm:$0xff]
        %v803 = vld [vmem:[%s6] sm:$0x1]
        %v805 = vlaneseq
        %v806 = vshrl.u32 %v805, 7
        %v807 = vsub.s32 0, %v806
        %v808 = vrot.slane %v803, %v807
        %810 = vmatprep.subr.mxu0 0.0
        %811 = vmatpush1.msra.mxu0 %v787
        %812 = vmatprep.subr.mxu0 0.0
        %813 = vmatpush1.msra.mxu0 %v788
        %814 = vmatprep.subr.mxu0 0.0
        %815 = vmatpush1.msra.mxu0 %v789
        %816 = vmatprep.subr.mxu0 0.0
        %817 = vmatpush1.msra.mxu0 %v790
        %818 = vmatprep.subr.mxu0 0.0
        %819 = vmatpush1.msra.mxu0 %v791
        %820 = vmatprep.subr.mxu0 0.0
        %821 = vmatpush1.msra.mxu0 %v792
        %822 = vmatprep.subr.mxu0 0.0
        %823 = vmatpush1.msra.mxu0 %v793
        %824 = vmatprep.subr.mxu0 0.0
        %825 = vmatpush1.msra.mxu0 %v794
        %826 = vmatprep.subr.mxu0 0.0
        %827 = vmatpush1.msra.mxu0 %v795
        %828 = vmatprep.subr.mxu0 0.0
        %829 = vmatpush1.msra.mxu0 %v796
        %830 = vmatprep.subr.mxu0 0.0
        %831 = vmatpush1.msra.mxu0 %v797
        %832 = vmatprep.subr.mxu0 0.0
        %833 = vmatpush1.msra.mxu0 %v798
        %834 = vmatprep.subr.mxu0 0.0
        %835 = vmatpush1.msra.mxu0 %v799
        %836 = vmatprep.subr.mxu0 0.0
        %837 = vmatpush1.msra.mxu0 %v800
        %838 = vmatprep.subr.mxu0 0.0
        %839 = vmatpush1.msra.mxu0 %v801
        %840 = vmatprep.subr.mxu0 0.0
        %841 = vmatpush1.msra.mxu0 %v802
        %842 = vmatprep.subr.mxu0 0.0
        %843 = vmatpush1.msra.mxu0 0.0
        %844 = vmatprep.subr.mxu0 0.0
        %845 = vmatpush1.msra.mxu0 0.0
        %846 = vmatprep.subr.mxu0 0.0
        %847 = vmatpush1.msra.mxu0 0.0
        %848 = vmatprep.subr.mxu0 0.0
        %849 = vmatpush1.msra.mxu0 0.0
        %850 = vmatprep.subr.mxu0 0.0
        %851 = vmatpush1.msra.mxu0 0.0
        %852 = vmatprep.subr.mxu0 0.0
        %853 = vmatpush1.msra.mxu0 0.0
        %854 = vmatprep.subr.mxu0 0.0
        %855 = vmatpush1.msra.mxu0 0.0
        %856 = vmatprep.subr.mxu0 0.0
        %857 = vmatpush1.msra.mxu0 0.0
        %858 = vmatprep.subr.mxu0 0.0
        %859 = vmatpush1.msra.mxu0 0.0
        %860 = vmatprep.subr.mxu0 0.0
        %861 = vmatpush1.msra.mxu0 0.0
        %862 = vmatprep.subr.mxu0 0.0
        %863 = vmatpush1.msra.mxu0 0.0
        %864 = vmatprep.subr.mxu0 0.0
        %865 = vmatpush1.msra.mxu0 0.0
        %866 = vmatprep.subr.mxu0 0.0
        %867 = vmatpush1.msra.mxu0 0.0
        %868 = vmatprep.subr.mxu0 0.0
        %869 = vmatpush1.msra.mxu0 0.0
        %870 = vmatprep.subr.mxu0 0.0
        %871 = vmatpush1.msra.mxu0 0.0
        %872 = vmatprep.subr.mxu0 0.0
        %873 = vmatpush1.msra.mxu0 0.0
        %874 = vmatprep.mubr.f32.mxu0 0.0
        %875 = vmatmul.mubr.f32.gmra.mrb[0].mxu0 %v324
        %v876 = vpop.f32.mrb[0].mxu0
        %v877 = vadd.f32 %v808, %v876
        %v878 = vpop.f32.mrb[0].mxu0
        %879 = vmatprep.mubr.f32.mxu0 0.0
        %880 = vmatmul.mubr.f32.gmra.mrb[0].mxu0 %v325
        %v881 = vpop.f32.mrb[0].mxu0
        %v882 = vadd.f32 %v808, %v881
        %v883 = vpop.f32.mrb[0].mxu0
        %884 = vdwg.mxu0
        %v885 = vadd.f32 %v779, %v877
        %v886 = vadd.f32 %v784, %v882
        %v887 = vmax.f32 %v885, 0.0
        %v888 = vmax.f32 %v886, 0.0
        %889 = vst [vmem:[%s315] sm:$0xff] %v887
        %890 = vst [vmem:[%s315 + $0x8] sm:$0xff] %v888
        %s891 = sand.u32 %s183, 1
        %s892 = scalar_lea.sflag [#allocation4], %s891
        %s893 = sand.u32 %s183, 1
        %s894 = smul.addr %s893, 16
        %s895 = scalar_lea.vmem [#allocation8], %s894
        // Predicated region
        $region61: #{tpu_custom_call.1} parent=47 // pred_check
          %p896 = pneg %p193
        $region62: #{tpu_custom_call.1} parent=47 // pred_check_branch
          %898 = sbr.rel (%p896) target = $region64
        $region63: #{tpu_custom_call.1} parent=47 // pred_region
          %s900 = ssub.s32 256, 256
          %901 = vsyncadd %s892, %s900
          %s902 = smul.addr %s23, 2
          %s903 = smul.addr %s902, 128
          %s904 = scalar_lea.hbm %s7, %s903
          %s905 = sshll.u32 %s895, 4
          %s906 = int_to_ptr.vmem [resolvable:$true] %s905
          %911 = dma.vmem_to_hbm [thread:$0]  %s906, 256, %s904, %s892, 128, 128, 8
        $region64: #{tpu_custom_call.1} parent=47 // pred_fallthru
          _
      $region48: #{tpu_custom_call.1} parent=5 // pred_fallthru
        _
      %p912 = scmp.le.s32.totalorder 2, %s18
      // Predicated region
      $region65: #{tpu_custom_call.1} parent=5 // pred_check
        %p913 = pneg %p912
      $region66: #{tpu_custom_call.1} parent=5 // pred_check_branch
        %915 = sbr.rel (%p913) target = $region68
      $region67: #{tpu_custom_call.1} parent=5 // pred_region
        %s916 = ssub.s32 %s18, 2
        // Predicated region
        $region69: #{tpu_custom_call.1} parent=67 // pred_check
          %p917 = pneg %p199
        $region70: #{tpu_custom_call.1} parent=67 // pred_check_branch
          %919 = sbr.rel (%p917) target = $region72
        $region71: #{tpu_custom_call.1} parent=67 // pred_region
          %s920 = sand.u32 %s184, 1
          %s921 = scalar_lea.sflag [#allocation4], %s920
          %s922 = sand.u32 %s184, 1
          %s923 = smul.addr %s922, 16
          %s924 = scalar_lea.vmem [#allocation8], %s923
          %925 = dma.done %s921, 256
        $region72: #{tpu_custom_call.1} parent=67 // pred_fallthru
          _
      $region68: #{tpu_custom_call.1} parent=5 // pred_fallthru
        _
    $region6: #{tpu_custom_call.1} parent=1 // loop_footer
      %s22 = sadd.s32 1, %s18
    $region7: #{tpu_custom_call.1} parent=1 // loop_footer_branch
      %17 = sbr.rel target = $region3
    $region8: #{tpu_custom_call.1} parent=1 // loop_exit
      _
    %926 = vsyncpa [#allocation3], 1
    %s927 = scalar_lea.sflag [#allocation3], 1
    %928 = vsyncpa %s927, 1
    %929 = vsyncpa [#allocation6], 1
    %930 = vsyncpa [#allocation4], 1
    %s931 = scalar_lea.sflag [#allocation4], 1
    %932 = vsyncpa %s931, 1

</llo_original>
